<compile_context>
chip_gen: v5e
topology: v5e:2x2
jax: 0.10.0
libtpu: 0.0.40
codegen_flags: <defaults>
</compile_context>

<pallas_src>
import jax
import jax.numpy as jnp
from jax import lax
from jax.experimental import pallas as pl
from jax.experimental.pallas import tpu as pltpu


_LANE = 128
_VMEM_BUDGET = 24 * 1024 * 1024      # target double-buffered pipeline footprint (v7x-safe)
_VMEM_LIMIT = 32 * 1024 * 1024       # scoped VMEM limit passed to the compiler
_MAX_SINGLE_K = 2048                 # single-K-step (no reduction axis) up to this padded K


def _round_up(v, m):
    return ((v + m - 1) // m) * m


# --------------------------------------------------------------------------- kernels
def _linear_relu_kernel(x_ref, w_ref, b_ref, o_ref):
    """Single-K-step: whole reduction in one MXU call, no scratch.

    x_ref: (tm, Kp)  w_ref: (Kp, tn)  b_ref: (1, tn)  o_ref: (tm, tn)
    """
    y = lax.dot_general(
        x_ref[...], w_ref[...],
        dimension_numbers=(((1,), (0,)), ((), ())),
        preferred_element_type=jnp.float32,
    )
    o_ref[...] = jnp.maximum(y + b_ref[...], 0.0).astype(o_ref.dtype)


def _linear_relu_kernel_acc(x_ref, w_ref, b_ref, o_ref, acc_ref):
    """Multi-K-step: f32 VMEM accumulator, bias+ReLU on the last k step.

    x_ref: (tm, tk)  w_ref: (tk, tn)  b_ref: (1, tn)  o_ref/acc_ref: (tm, tn)
    """
    k = pl.program_id(2)
    partial = lax.dot_general(
        x_ref[...], w_ref[...],
        dimension_numbers=(((1,), (0,)), ((), ())),
        preferred_element_type=jnp.float32,
    )

    @pl.when(k == 0)
    def _():
        acc_ref[...] = partial          # assign on first step (no zero+add)

    @pl.when(k > 0)
    def _():
        acc_ref[...] += partial

    @pl.when(k == pl.num_programs(2) - 1)
    def _():
        o_ref[...] = jnp.maximum(acc_ref[...] + b_ref[...], 0.0).astype(o_ref.dtype)


# --------------------------------------------------------------------------- tiling
def _pick_tiles(K, N, out_itemsize=4, tm_cap=512):
    """Pick (tn, tk) from layer dims; tm is chosen per call from the batch."""
    kp128 = _round_up(K, _LANE)
    np128 = _round_up(N, _LANE)
    tn = min(np128, 512)
    # Prefer a single K step (no reduction grid axis, no accumulator) when it fits.
    tk = kp128 if kp128 <= _MAX_SINGLE_K else 1024

    def footprint(tm, tn_, tk_, multi_k):
        return (2 * (tm * tk_ + tk_ * tn_ + tn_) * 4     # double-buffered x, W, bias
                + 2 * tm * tn_ * out_itemsize            # double-buffered output tile
                + (tm * tn_ * 4 if multi_k else 0))      # accumulator scratch

    while footprint(tm_cap, tn, tk, tk < kp128) > _VMEM_BUDGET:
        if tk > 512:
            tk = max(512, tk // 2)
        elif tn > 256:
            tn = _round_up(tn // 2, _LANE)
        elif tk > 256:
            tk //= 2
        elif tn > 128:
            tn = _round_up(tn // 2, _LANE)
        elif tk > 128:
            tk //= 2
        else:
            break
    return tn, tk


# --------------------------------------------------------------------------- wrapper
def prepare_hidden_layer_params(weight, bias):
    """One-time parameter prep (do at init, NOT per forward call).

    weight: (output_size, input_size)  -- PyTorch nn.Linear convention
    bias:   (output_size,)
    Returns a dict with the weight padded+transposed to (Kp, Np) and the bias as (1, Np) f32.
    """
    N, K = weight.shape
    assert bias.shape == (N,)
    tn, tk = _pick_tiles(K, N)
    Kp = _round_up(K, tk)
    Np = _round_up(N, tn)

    w = weight
    if (Np != N) or (Kp != K):
        w = jnp.pad(w, ((0, Np - N), (0, Kp - K)))   # zero padding -> exact matmul
    w_t = jnp.transpose(w)                           # (Kp, Np): contraction dim on sublanes

    b = bias.astype(jnp.float32)
    if Np != N:
        b = jnp.pad(b, (0, Np - N))
    b2d = b.reshape(1, Np)

    return {"w_t": w_t, "b2d": b2d, "N": N, "K": K, "tn": tn, "tk": tk}


def hidden_layer_apply(x, params, *, out_dtype=None):
    """Forward pass: relu(x @ W^T + b) with pre-prepared params."""
    B, K = x.shape
    assert K == params["K"], "x feature dim must match weight in-dim"
    w_t, b2d = params["w_t"], params["b2d"]
    tn, tk = params["tn"], params["tk"]
    N = params["N"]
    Kp, Np = w_t.shape
    out_dtype = out_dtype or x.dtype

    tm = min(_round_up(B, _LANE), 512)
    Mp = _round_up(B, tm)
    x_p = x
    if (Mp != B) or (Kp != K):
        x_p = jnp.pad(x, ((0, Mp - B), (0, Kp - K)))

    grid_m = Mp // tm
    grid_n = Np // tn
    # v7x megacore: with a single output tile one TensorCore would idle; split along N
    # when possible (free / ignored on single-TC v5e/v6e).
    if grid_m == 1 and grid_n == 1 and tn % 256 == 0:
        tn //= 2
        grid_n = Np // tn

    single_k = (tk == Kp)
    if single_k:
        grid = (grid_m, grid_n)
        in_specs = [
            pl.BlockSpec((tm, Kp), lambda i, j: (i, 0)),   # x
            pl.BlockSpec((Kp, tn), lambda i, j: (0, j)),   # weight (pre-transposed)
            pl.BlockSpec((1, tn), lambda i, j: (0, j)),    # bias
        ]
        out_specs = pl.BlockSpec((tm, tn), lambda i, j: (i, j))
        scratch = []
        kernel = _linear_relu_kernel
        dims = ("parallel", "parallel")
    else:
        grid = (grid_m, grid_n, Kp // tk)
        in_specs = [
            pl.BlockSpec((tm, tk), lambda i, j, k: (i, k)),
            pl.BlockSpec((tk, tn), lambda i, j, k: (k, j)),
            pl.BlockSpec((1, tn), lambda i, j, k: (0, j)),
        ]
        out_specs = pl.BlockSpec((tm, tn), lambda i, j, k: (i, j))
        scratch = [pltpu.VMEM((tm, tn), jnp.float32)]
        kernel = _linear_relu_kernel_acc
        dims = ("parallel", "parallel", "arbitrary")

    out_padded = pl.pallas_call(
        kernel,
        out_shape=jax.ShapeDtypeStruct((Mp, Np), out_dtype),
        grid_spec=pltpu.PrefetchScalarGridSpec(
            num_scalar_prefetch=0,
            grid=grid,
            in_specs=in_specs,
            out_specs=out_specs,
            scratch_shapes=scratch,
        ),
        compiler_params=pltpu.CompilerParams(
            dimension_semantics=dims,
            vmem_limit_bytes=_VMEM_LIMIT,
        ),
    )(x_p, w_t, b2d)

    return out_padded[:B, :N]


def hidden_layer(x, weight, bias):
    """Convenience one-shot forward (prepares params per call; prefer prepare+apply)."""
    return hidden_layer_apply(x, prepare_hidden_layer_params(weight, bias))


def _reference(x, weight, bias):
    y = jnp.dot(x, weight.T, precision=jax.lax.Precision.HIGHEST) + bias
    return jnp.maximum(y, 0.0)


if __name__ == "__main__":
    key = jax.random.PRNGKey(0)

    def make_case(k, batch, input_size, output_size):
        kx, kw, kb = jax.random.split(k, 3)
        bound = 1.0 / (input_size ** 0.5)
        x = jax.random.normal(kx, (batch, input_size), dtype=jnp.float32)
        w = jax.random.uniform(kw, (output_size, input_size),
                               minval=-bound, maxval=bound, dtype=jnp.float32)
        b = jax.random.uniform(kb, (output_size,),
                               minval=-bound, maxval=bound, dtype=jnp.float32)
        return x, w, b

    # (batch, input_size, output_size):
    #  case 0: tiny shapes matching typical module usage (single 128x128 tile)
    #  case 1: non-aligned shapes -> padding path + N split across tiles
    #  case 2: large K -> multi-K grid with f32 accumulator path
    cases = [(8, 32, 16), (200, 300, 130), (64, 2100, 96)]

    for idx, (batch, in_sz, out_sz) in enumerate(cases):
        kc = jax.random.fold_in(key, idx)
        x, w, b = make_case(kc, batch, in_sz, out_sz)
        if idx == 0:
            out = jax.block_until_ready(hidden_layer(x, w, b))
        else:
            params = prepare_hidden_layer_params(w, b)   # once at "init"
            out = jax.block_until_ready(hidden_layer_apply(x, params))
        ref = _reference(x, w, b)
        assert out.shape == (batch, out_sz), f"case {idx}: bad shape {out.shape}"
        assert jnp.allclose(out, ref, atol=1e-3, rtol=1e-3), f"case {idx}: mismatch"

    print("KERNEL_OK")
</pallas_src>

<mosaic_0001>
module attributes {stable_mosaic.version = 11 : i64} {
  func.func @_linear_relu_kernel(%arg0: i32, %arg1: i32, %arg2: memref<128x128xf32, #tpu.memory_space<vmem>>, %arg3: memref<128x128xf32, #tpu.memory_space<vmem>>, %arg4: memref<1x128xf32, #tpu.memory_space<vmem>>, %arg5: memref<128x128xf32, #tpu.memory_space<vmem>>) attributes {dimension_semantics = [#tpu.dimension_semantics<parallel>, #tpu.dimension_semantics<parallel>], iteration_bounds = array<i64: 1, 1>, scalar_prefetch = 0 : i64, scratch_operands = 0 : i64, tpu.core_type = #tpu.core_type<tc>, window_params = [{transform_indices = @transform_0, window_bounds = array<i64: 128, 128>}, {transform_indices = @transform_1, window_bounds = array<i64: 128, 128>}, {transform_indices = @transform_2, window_bounds = array<i64: 1, 128>}, {transform_indices = @transform_3, window_bounds = array<i64: 128, 128>}]} {
    %c0 = arith.constant 0 : index
    %c0_0 = arith.constant 0 : index
    %0 = vector.load %arg2[%c0, %c0_0] : memref<128x128xf32, #tpu.memory_space<vmem>>, vector<128x128xf32>
    %c0_1 = arith.constant 0 : index
    %c0_2 = arith.constant 0 : index
    %1 = vector.load %arg3[%c0_1, %c0_2] : memref<128x128xf32, #tpu.memory_space<vmem>>, vector<128x128xf32>
    %cst = arith.constant dense<0.000000e+00> : vector<128x128xf32>
    %2 = tpu.matmul %0, %1, %cst {dimension_numbers = #tpu.dot_dimension_numbers<[1], [0], [0], [1], [0, 0, 1, 1], [], []>} : vector<128x128xf32>, vector<128x128xf32>, vector<128x128xf32> -> vector<128x128xf32>
    %c0_3 = arith.constant 0 : index
    %c0_4 = arith.constant 0 : index
    %3 = vector.load %arg4[%c0_3, %c0_4] : memref<1x128xf32, #tpu.memory_space<vmem>>, vector<1x128xf32>
    %4 = vector.broadcast %3 : vector<1x128xf32> to vector<128x128xf32>
    %5 = arith.addf %2, %4 : vector<128x128xf32>
    %cst_5 = arith.constant 0.000000e+00 : f32
    %6 = vector.broadcast %cst_5 : f32 to vector<128x128xf32>
    %7 = arith.maximumf %5, %6 : vector<128x128xf32>
    %c0_6 = arith.constant 0 : index
    %c0_7 = arith.constant 0 : index
    %8 = vector.load %arg5[%c0_6, %c0_7] : memref<128x128xf32, #tpu.memory_space<vmem>>, vector<128x128xf32>
    tpu.vector_store %arg5[%c0_6, %c0_7], %7 {strides = array<i32>} : memref<128x128xf32, #tpu.memory_space<vmem>>, vector<128x128xf32>,
    return
  }
  func.func @transform_0(%arg0: i32, %arg1: i32) -> (i32, i32) {
    %c0_i32 = arith.constant 0 : i32
    %c0_i32_0 = arith.constant 0 : i32
    return %arg0, %c0_i32 : i32, i32
  }
  func.func @transform_1(%arg0: i32, %arg1: i32) -> (i32, i32) {
    %c0_i32 = arith.constant 0 : i32
    %c0_i32_0 = arith.constant 0 : i32
    return %c0_i32, %arg1 : i32, i32
  }
  func.func @transform_2(%arg0: i32, %arg1: i32) -> (i32, i32) {
    %c0_i32 = arith.constant 0 : i32
    %c0_i32_0 = arith.constant 0 : i32
    return %c0_i32, %arg1 : i32, i32
  }
  func.func @transform_3(%arg0: i32, %arg1: i32) -> (i32, i32) {
    %c0_i32 = arith.constant 0 : i32
    return %arg0, %arg1 : i32, i32
  }
}

</mosaic_0001>

<llo_original>
// kernel: tpu_custom_call.1
$region0: #{tpu_custom_call.1}
  #allocation0 [shape = 'u32[]', space=smem, size = 0x4, offset = 0x4, fixed_abs, tag = 'smem constant byte address 0x4 - core index']
  #allocation1 [shape = 'u32[72,128]{1,0:T(1,128)}', space=vmem, size = 0x9000, scoped, tag = 'internal scratch']
  %s0 = inlined_call_operand.hbm [shape: f32[128,128], index: 0, kind: input, shape index: {}]
  %s1 = inlined_call_operand.hbm [shape: f32[128,128], index: 1, kind: input, shape index: {}]
  %s2 = inlined_call_operand.vmem [shape: f32[1,128], index: 2, kind: input, shape index: {}]
  %s3 = inlined_call_operand.hbm [shape: f32[128,128], index: 3, kind: output, shape index: {}]
  %s4 = sld [smem:[#allocation0]]
  $region30: #{tpu_custom_call.1} parent=0
    _
  %s6 = ssub.s32 1, %s4
  %s7 = scalar_select 0, %s6, %s4
  $region1: #{tpu_custom_call.1} parent=0
    #allocation2 [shape = 'u8[65536]{0}', space=vmem, size = 0x10000, scoped, tag = 'input window, operand 0, single buffered']
    #allocation3 [shape = 's32[1]{0}', space=sflag, size = 0x4, scoped, tag = 'scoped memory for tpu_custom_call.1']
    #allocation4 [shape = 's32[1]{0}', space=sflag, size = 0x4, scoped, tag = 'scoped memory for tpu_custom_call.1']
    #allocation5 [shape = 'u8[65536]{0}', space=vmem, size = 0x10000, scoped, tag = 'input window, operand 1, single buffered']
    #allocation6 [shape = 's32[1]{0}', space=sflag, size = 0x4, scoped, tag = 'scoped memory for tpu_custom_call.1']
    #allocation7 [shape = 'u8[65536]{0}', space=vmem, size = 0x10000, scoped, tag = 'output window, operand 0, single buffered']
    %8 = vsyncpa [#allocation3], 0
    %9 = vsyncpa [#allocation6], 0
    %10 = vsyncpa [#allocation4], 0
    // Predicated region
    $region2: #{tpu_custom_call.1} parent=1 // pred_check
      _
    $region3: #{tpu_custom_call.1} parent=1 // pred_check_branch
      %12 = sbr.rel (0) target = $region5
    $region4: #{tpu_custom_call.1} parent=1 // pred_region
      %14 = vsyncadd [#allocation3], 0
      %s15 = sshll.u32 %s0, 4
      %s16 = int_to_ptr.hbm [resolvable:$true] %s15
      %s17 = sshll.u32 [#allocation2], 4
      %s18 = int_to_ptr.vmem [resolvable:$true] %s17
      %23 = dma.hbm_to_vmem [thread:$0]  %s16, 2048, %s18, [#allocation3], 128, 128, 8
    $region5: #{tpu_custom_call.1} parent=1 // pred_fallthru
      _
    // Predicated region
    $region6: #{tpu_custom_call.1} parent=1 // pred_check
      _
    $region7: #{tpu_custom_call.1} parent=1 // pred_check_branch
      %25 = sbr.rel (0) target = $region9
    $region8: #{tpu_custom_call.1} parent=1 // pred_region
      %27 = vsyncadd [#allocation6], 0
      %s28 = sshll.u32 %s1, 4
      %s29 = int_to_ptr.hbm [resolvable:$true] %s28
      %s30 = sshll.u32 [#allocation5], 4
      %s31 = int_to_ptr.vmem [resolvable:$true] %s30
      %36 = dma.hbm_to_vmem [thread:$0]  %s29, 2048, %s31, [#allocation6], 128, 128, 8
    $region9: #{tpu_custom_call.1} parent=1 // pred_fallthru
      _
    // Predicated region
    $region10: #{tpu_custom_call.1} parent=1 // pred_check
      _
    $region11: #{tpu_custom_call.1} parent=1 // pred_check_branch
      %38 = sbr.rel (0) target = $region13
    $region12: #{tpu_custom_call.1} parent=1 // pred_region
      _
    $region13: #{tpu_custom_call.1} parent=1 // pred_fallthru
      _
    // Predicated region
    $region14: #{tpu_custom_call.1} parent=1 // pred_check
      _
    $region15: #{tpu_custom_call.1} parent=1 // pred_check_branch
      %40 = sbr.rel (0) target = $region17
    $region16: #{tpu_custom_call.1} parent=1 // pred_region
      %42 = dma.done [#allocation3], 2048
    $region17: #{tpu_custom_call.1} parent=1 // pred_fallthru
      _
    // Predicated region
    $region18: #{tpu_custom_call.1} parent=1 // pred_check
      _
    $region19: #{tpu_custom_call.1} parent=1 // pred_check_branch
      %44 = sbr.rel (0) target = $region21
    $region20: #{tpu_custom_call.1} parent=1 // pred_region
      %46 = dma.done [#allocation6], 2048
    $region21: #{tpu_custom_call.1} parent=1 // pred_fallthru
      _
    %v47 = vld [vmem:[#allocation2] sm:$0xff]
    %v48 = vld [vmem:[#allocation2 + $0x8] sm:$0xff]
    %v49 = vld [vmem:[#allocation2 + $0x10] sm:$0xff]
    %v50 = vld [vmem:[#allocation2 + $0x18] sm:$0xff]
    %v51 = vld [vmem:[#allocation2 + $0x20] sm:$0xff]
    %v52 = vld [vmem:[#allocation2 + $0x28] sm:$0xff]
    %v53 = vld [vmem:[#allocation2 + $0x30] sm:$0xff]
    %v54 = vld [vmem:[#allocation2 + $0x38] sm:$0xff]
    %v55 = vld [vmem:[#allocation2 + $0x40] sm:$0xff]
    %v56 = vld [vmem:[#allocation2 + $0x48] sm:$0xff]
    %v57 = vld [vmem:[#allocation2 + $0x50] sm:$0xff]
    %v58 = vld [vmem:[#allocation2 + $0x58] sm:$0xff]
    %v59 = vld [vmem:[#allocation2 + $0x60] sm:$0xff]
    %v60 = vld [vmem:[#allocation2 + $0x68] sm:$0xff]
    %v61 = vld [vmem:[#allocation2 + $0x70] sm:$0xff]
    %v62 = vld [vmem:[#allocation2 + $0x78] sm:$0xff]
    %v63 = vld [vmem:[#allocation5] sm:$0xff]
    %v64 = vld [vmem:[#allocation5 + $0x8] sm:$0xff]
    %v65 = vld [vmem:[#allocation5 + $0x10] sm:$0xff]
    %v66 = vld [vmem:[#allocation5 + $0x18] sm:$0xff]
    %v67 = vld [vmem:[#allocation5 + $0x20] sm:$0xff]
    %v68 = vld [vmem:[#allocation5 + $0x28] sm:$0xff]
    %v69 = vld [vmem:[#allocation5 + $0x30] sm:$0xff]
    %v70 = vld [vmem:[#allocation5 + $0x38] sm:$0xff]
    %v71 = vld [vmem:[#allocation5 + $0x40] sm:$0xff]
    %v72 = vld [vmem:[#allocation5 + $0x48] sm:$0xff]
    %v73 = vld [vmem:[#allocation5 + $0x50] sm:$0xff]
    %v74 = vld [vmem:[#allocation5 + $0x58] sm:$0xff]
    %v75 = vld [vmem:[#allocation5 + $0x60] sm:$0xff]
    %v76 = vld [vmem:[#allocation5 + $0x68] sm:$0xff]
    %v77 = vld [vmem:[#allocation5 + $0x70] sm:$0xff]
    %v78 = vld [vmem:[#allocation5 + $0x78] sm:$0xff]
    %v79 = vld [vmem:[%s2] sm:$0x1]
    %v81 = vperm.slane %v79, 0
    %83 = vmatpush.msra.mxu0 %v78
    %84 = vmatpush.msra.mxu0 %v77
    %85 = vmatpush.msra.mxu0 %v76
    %86 = vmatpush.msra.mxu0 %v75
    %87 = vmatpush.msra.mxu0 %v74
    %88 = vmatpush.msra.mxu0 %v73
    %89 = vmatpush.msra.mxu0 %v72
    %90 = vmatpush.msra.mxu0 %v71
    %91 = vmatpush.msra.mxu0 %v70
    %92 = vmatpush.msra.mxu0 %v69
    %93 = vmatpush.msra.mxu0 %v68
    %94 = vmatpush.msra.mxu0 %v67
    %95 = vmatpush.msra.mxu0 %v66
    %96 = vmatpush.msra.mxu0 %v65
    %97 = vmatpush.msra.mxu0 %v64
    %98 = vmatpush.msra.mxu0 %v63
    %99 = vmatmul.f32.gmra.mxu0 %v47
    %v100 = vpop.f32.mrf.mxu0
    %v101 = vadd.f32 %v81, %v100
    %102 = vmatmul.f32.gmra.mxu0 %v48
    %v103 = vpop.f32.mrf.mxu0
    %v104 = vadd.f32 %v81, %v103
    %105 = vmatmul.f32.gmra.mxu0 %v49
    %v106 = vpop.f32.mrf.mxu0
    %v107 = vadd.f32 %v81, %v106
    %108 = vmatmul.f32.gmra.mxu0 %v50
    %v109 = vpop.f32.mrf.mxu0
    %v110 = vadd.f32 %v81, %v109
    %111 = vmatmul.f32.gmra.mxu0 %v51
    %v112 = vpop.f32.mrf.mxu0
    %v113 = vadd.f32 %v81, %v112
    %114 = vmatmul.f32.gmra.mxu0 %v52
    %v115 = vpop.f32.mrf.mxu0
    %v116 = vadd.f32 %v81, %v115
    %117 = vmatmul.f32.gmra.mxu0 %v53
    %v118 = vpop.f32.mrf.mxu0
    %v119 = vadd.f32 %v81, %v118
    %120 = vmatmul.f32.gmra.mxu0 %v54
    %v121 = vpop.f32.mrf.mxu0
    %v122 = vadd.f32 %v81, %v121
    %123 = vmatmul.f32.gmra.mxu0 %v55
    %v124 = vpop.f32.mrf.mxu0
    %v125 = vadd.f32 %v81, %v124
    %126 = vmatmul.f32.gmra.mxu0 %v56
    %v127 = vpop.f32.mrf.mxu0
    %v128 = vadd.f32 %v81, %v127
    %129 = vmatmul.f32.gmra.mxu0 %v57
    %v130 = vpop.f32.mrf.mxu0
    %v131 = vadd.f32 %v81, %v130
    %132 = vmatmul.f32.gmra.mxu0 %v58
    %v133 = vpop.f32.mrf.mxu0
    %v134 = vadd.f32 %v81, %v133
    %135 = vmatmul.f32.gmra.mxu0 %v59
    %v136 = vpop.f32.mrf.mxu0
    %v137 = vadd.f32 %v81, %v136
    %138 = vmatmul.f32.gmra.mxu0 %v60
    %v139 = vpop.f32.mrf.mxu0
    %v140 = vadd.f32 %v81, %v139
    %141 = vmatmul.f32.gmra.mxu0 %v61
    %v142 = vpop.f32.mrf.mxu0
    %v143 = vadd.f32 %v81, %v142
    %144 = vmatmul.f32.gmra.mxu0 %v62
    %v145 = vpop.f32.mrf.mxu0
    %v146 = vadd.f32 %v81, %v145
    %147 = vdwg.mxu0
    %v148 = vmax.f32 %v101, 0.0
    %v149 = vmax.f32 %v104, 0.0
    %v150 = vmax.f32 %v107, 0.0
    %v151 = vmax.f32 %v110, 0.0
    %v152 = vmax.f32 %v113, 0.0
    %v153 = vmax.f32 %v116, 0.0
    %v154 = vmax.f32 %v119, 0.0
    %v155 = vmax.f32 %v122, 0.0
    %v156 = vmax.f32 %v125, 0.0
    %v157 = vmax.f32 %v128, 0.0
    %v158 = vmax.f32 %v131, 0.0
    %v159 = vmax.f32 %v134, 0.0
    %v160 = vmax.f32 %v137, 0.0
    %v161 = vmax.f32 %v140, 0.0
    %v162 = vmax.f32 %v143, 0.0
    %v163 = vmax.f32 %v146, 0.0
    %164 = vst [vmem:[#allocation7] sm:$0xff] %v148
    %165 = vst [vmem:[#allocation7 + $0x8] sm:$0xff] %v149
    %166 = vst [vmem:[#allocation7 + $0x10] sm:$0xff] %v150
    %167 = vst [vmem:[#allocation7 + $0x18] sm:$0xff] %v151
    %168 = vst [vmem:[#allocation7 + $0x20] sm:$0xff] %v152
    %169 = vst [vmem:[#allocation7 + $0x28] sm:$0xff] %v153
    %170 = vst [vmem:[#allocation7 + $0x30] sm:$0xff] %v154
    %171 = vst [vmem:[#allocation7 + $0x38] sm:$0xff] %v155
    %172 = vst [vmem:[#allocation7 + $0x40] sm:$0xff] %v156
    %173 = vst [vmem:[#allocation7 + $0x48] sm:$0xff] %v157
    %174 = vst [vmem:[#allocation7 + $0x50] sm:$0xff] %v158
    %175 = vst [vmem:[#allocation7 + $0x58] sm:$0xff] %v159
    %176 = vst [vmem:[#allocation7 + $0x60] sm:$0xff] %v160
    %177 = vst [vmem:[#allocation7 + $0x68] sm:$0xff] %v161
    %178 = vst [vmem:[#allocation7 + $0x70] sm:$0xff] %v162
    %179 = vst [vmem:[#allocation7 + $0x78] sm:$0xff] %v163
    // Predicated region
    $region22: #{tpu_custom_call.1} parent=1 // pred_check
      _
    $region23: #{tpu_custom_call.1} parent=1 // pred_check_branch
      %181 = sbr.rel (0) target = $region25
    $region24: #{tpu_custom_call.1} parent=1 // pred_region
      %183 = vsyncadd [#allocation4], 0
      %s184 = sshll.u32 [#allocation7], 4
      %s185 = int_to_ptr.vmem [resolvable:$true] %s184
      %s186 = sshll.u32 %s3, 4
      %s187 = int_to_ptr.hbm [resolvable:$true] %s186
      %192 = dma.vmem_to_hbm [thread:$0]  %s185, 2048, %s187, [#allocation4], 128, 128, 8
    $region25: #{tpu_custom_call.1} parent=1 // pred_fallthru
      _
    // Predicated region
    $region26: #{tpu_custom_call.1} parent=1 // pred_check
      _
    $region27: #{tpu_custom_call.1} parent=1 // pred_check_branch
      %194 = sbr.rel (0) target = $region29
    $region28: #{tpu_custom_call.1} parent=1 // pred_region
      %196 = dma.done [#allocation4], 2048
    $region29: #{tpu_custom_call.1} parent=1 // pred_fallthru
      _
    %197 = vsyncpa [#allocation3], 1
    %198 = vsyncpa [#allocation6], 1
    %199 = vsyncpa [#allocation4], 1

</llo_original>
